<compile_context>
chip_gen: v6e
topology: v6e:2x2x1
jax: 0.10.0
libtpu: 0.0.40
codegen_flags: <defaults>
</compile_context>

<pallas_src>
import functools

import jax
import jax.numpy as jnp
from jax.experimental import pallas as pl
from jax.experimental.pallas import tpu as pltpu

ZDIM = 4
D_IN = 135
H1, H2, H3 = 128, 64, 32
LN_EPS = 1e-5


def _round_up(n, m):
    return ((n + m - 1) // m) * m


def _layernorm(x, gamma, beta):
    # PyTorch LayerNorm over last dim, biased variance, eps=1e-5 (all f32).
    mu = jnp.mean(x, axis=-1, keepdims=True)
    xc = x - mu
    var = jnp.mean(xc * xc, axis=-1, keepdims=True)
    inv = jax.lax.rsqrt(var + LN_EPS)
    return xc * inv * gamma + beta


def encoder_kernel(x_ref,
                   w1_ref, b1_ref, g1_ref, be1_ref,
                   w2_ref, b2_ref, g2_ref, be2_ref,
                   w3_ref, b3_ref, g3_ref, be3_ref,
                   w4_ref, b4_ref,
                   o_ref):
    cdt = w1_ref.dtype  # matmul-operand (compute) dtype, e.g. bfloat16

    x = x_ref[...]  # (TB, 135), compute dtype

    # Layer 1: Linear(135,128) -> ReLU -> (Dropout=id) -> LayerNorm(128)
    h = jnp.dot(x, w1_ref[...], preferred_element_type=jnp.float32) + b1_ref[...]
    h = jnp.maximum(h, 0.0)
    h = _layernorm(h, g1_ref[...], be1_ref[...])

    # Layer 2: Linear(128,64) -> ReLU -> LayerNorm(64)
    h = jnp.dot(h.astype(cdt), w2_ref[...],
                preferred_element_type=jnp.float32) + b2_ref[...]
    h = jnp.maximum(h, 0.0)
    h = _layernorm(h, g2_ref[...], be2_ref[...])

    # Layer 3: Linear(64,32) -> ReLU -> LayerNorm(32)
    h = jnp.dot(h.astype(cdt), w3_ref[...],
                preferred_element_type=jnp.float32) + b3_ref[...]
    h = jnp.maximum(h, 0.0)
    h = _layernorm(h, g3_ref[...], be3_ref[...])

    # Output: Linear(32, ZDIM)
    out = jnp.dot(h.astype(cdt), w4_ref[...],
                  preferred_element_type=jnp.float32) + b4_ref[...]
    o_ref[...] = out.astype(o_ref.dtype)


@functools.partial(jax.jit, static_argnames=("tb", "compute_dtype"))
def encoder_forward(x, params, *, tb=256, compute_dtype=jnp.bfloat16):
    """x: [B, 135] float32 -> [B, ZDIM] float32."""
    B, D = x.shape
    assert D == D_IN
    assert tb % 8 == 0

    (w1, b1, g1, be1, w2, b2, g2, be2, w3, b3, g3, be3, w4, b4) = params

    # Clamp the tile to the (sublane-rounded) batch so tiny batches don't pad
    # all the way up to tb, then zero-pad the batch to a multiple of the tile.
    tb = min(tb, _round_up(B, 8))
    b_pad = _round_up(B, tb)
    if b_pad != B:
        x = jnp.pad(x, ((0, b_pad - B), (0, 0)))

    # bf16 matmul operands: halves the dominant x HBM stream and doubles the
    # effective MXU rate.  Biases / LayerNorm params stay f32.
    x = x.astype(compute_dtype)
    w1c, w2c, w3c, w4c = (w.astype(compute_dtype) for w in (w1, w2, w3, w4))

    full = lambda shape: pl.BlockSpec(shape, lambda i: (0, 0))

    itemsize = jnp.dtype(compute_dtype).itemsize
    wflops = D_IN * H1 + H1 * H2 + H2 * H3 + H3 * ZDIM
    cost = pl.CostEstimate(
        flops=2 * b_pad * wflops,
        transcendentals=3 * b_pad,  # one rsqrt per row per LayerNorm
        bytes_accessed=(b_pad * D_IN * itemsize          # x stream in
                        + b_pad * ZDIM * 4               # output
                        + wflops * itemsize              # weights (resident)
                        + (3 * (H1 + H2 + H3) + 2 * ZDIM) * 4),  # b/gamma/beta
    )

    out = pl.pallas_call(
        encoder_kernel,
        out_shape=jax.ShapeDtypeStruct((b_pad, ZDIM), jnp.float32),
        grid_spec=pltpu.PrefetchScalarGridSpec(
            num_scalar_prefetch=0,
            grid=(b_pad // tb,),
            in_specs=[
                pl.BlockSpec((tb, D_IN), lambda i: (i, 0)),       # x tile
                full((D_IN, H1)), full((1, H1)), full((1, H1)), full((1, H1)),
                full((H1, H2)),   full((1, H2)), full((1, H2)), full((1, H2)),
                full((H2, H3)),   full((1, H3)), full((1, H3)), full((1, H3)),
                full((H3, ZDIM)), full((1, ZDIM)),
            ],
            out_specs=pl.BlockSpec((tb, ZDIM), lambda i: (i, 0)),
        ),
        compiler_params=pltpu.CompilerParams(
            dimension_semantics=("parallel",)),   # megacore-shardable on v7x
        cost_estimate=cost,
    )(x, w1c, b1, g1, be1, w2c, b2, g2, be2, w3c, b3, g3, be3, w4c, b4)

    return out[:B]


def init_params(key):
    """Deterministic synthetic parameters matching the module's shapes."""
    ks = jax.random.split(key, 8)

    def linear(k, fan_in, fan_out):
        # PyTorch default Linear init: U(-1/sqrt(fan_in), 1/sqrt(fan_in))
        bound = 1.0 / jnp.sqrt(fan_in)
        kw, kb = jax.random.split(k)
        w = jax.random.uniform(kw, (fan_in, fan_out), jnp.float32, -bound, bound)
        b = jax.random.uniform(kb, (1, fan_out), jnp.float32, -bound, bound)
        return w, b

    w1, b1 = linear(ks[0], D_IN, H1)
    w2, b2 = linear(ks[1], H1, H2)
    w3, b3 = linear(ks[2], H2, H3)
    w4, b4 = linear(ks[3], H3, ZDIM)
    # LayerNorm affine params (PyTorch init: gamma=1, beta=0)
    g1, be1 = jnp.ones((1, H1), jnp.float32), jnp.zeros((1, H1), jnp.float32)
    g2, be2 = jnp.ones((1, H2), jnp.float32), jnp.zeros((1, H2), jnp.float32)
    g3, be3 = jnp.ones((1, H3), jnp.float32), jnp.zeros((1, H3), jnp.float32)
    return (w1, b1, g1, be1, w2, b2, g2, be2, w3, b3, g3, be3, w4, b4)


def reference_forward(x, params, compute_dtype=jnp.bfloat16):
    """Pure-JAX reference mirroring the kernel's precision handling."""
    (w1, b1, g1, be1, w2, b2, g2, be2, w3, b3, g3, be3, w4, b4) = params

    def ln(h, g, b):
        mu = jnp.mean(h, axis=-1, keepdims=True)
        var = jnp.mean((h - mu) ** 2, axis=-1, keepdims=True)
        return (h - mu) * jax.lax.rsqrt(var + LN_EPS) * g + b

    def dot(a, w):
        return jnp.dot(a.astype(compute_dtype), w.astype(compute_dtype),
                       preferred_element_type=jnp.float32)

    h = ln(jnp.maximum(dot(x, w1) + b1, 0.0), g1, be1)
    h = ln(jnp.maximum(dot(h, w2) + b2, 0.0), g2, be2)
    h = ln(jnp.maximum(dot(h, w3) + b3, 0.0), g3, be3)
    return dot(h, w4) + b4


if __name__ == "__main__":
    key = jax.random.PRNGKey(0)
    kx, kp = jax.random.split(key)
    params = init_params(kp)

    # Small demo shapes. B=20 exercises the pad-to-tile path (tile clamps to
    # 24 rows, one grid step); the second call forces a multi-step grid.
    B = 20
    x = jax.random.normal(kx, (B, D_IN), jnp.float32)
    out = jax.block_until_ready(encoder_forward(x, params))
    ref = reference_forward(x, params)
    assert out.shape == (B, ZDIM)
    assert jnp.allclose(out, ref, atol=2e-3, rtol=2e-3), "mismatch vs reference"

    B2 = 48
    x2 = jax.random.normal(kx, (B2, D_IN), jnp.float32)
    out2 = jax.block_until_ready(encoder_forward(x2, params, tb=16))  # grid=3
    ref2 = reference_forward(x2, params)
    assert out2.shape == (B2, ZDIM)
    assert jnp.allclose(out2, ref2, atol=2e-3, rtol=2e-3), "mismatch vs reference"

    print("KERNEL_OK")
</pallas_src>

<mosaic_0001>
module attributes {stable_mosaic.version = 11 : i64} {
  func.func @encoder_kernel(%arg0: i32, %arg1: memref<24x135xbf16, #tpu.memory_space<vmem>>, %arg2: memref<135x128xbf16, #tpu.memory_space<vmem>>, %arg3: memref<1x128xf32, #tpu.memory_space<vmem>>, %arg4: memref<1x128xf32, #tpu.memory_space<vmem>>, %arg5: memref<1x128xf32, #tpu.memory_space<vmem>>, %arg6: memref<128x64xbf16, #tpu.memory_space<vmem>>, %arg7: memref<1x64xf32, #tpu.memory_space<vmem>>, %arg8: memref<1x64xf32, #tpu.memory_space<vmem>>, %arg9: memref<1x64xf32, #tpu.memory_space<vmem>>, %arg10: memref<64x32xbf16, #tpu.memory_space<vmem>>, %arg11: memref<1x32xf32, #tpu.memory_space<vmem>>, %arg12: memref<1x32xf32, #tpu.memory_space<vmem>>, %arg13: memref<1x32xf32, #tpu.memory_space<vmem>>, %arg14: memref<32x4xbf16, #tpu.memory_space<vmem>>, %arg15: memref<1x4xf32, #tpu.memory_space<vmem>>, %arg16: memref<24x4xf32, #tpu.memory_space<vmem>>) attributes {dimension_semantics = [#tpu.dimension_semantics<parallel>], iteration_bounds = array<i64: 1>, scalar_prefetch = 0 : i64, scratch_operands = 0 : i64, tpu.core_type = #tpu.core_type<tc>, window_params = [{transform_indices = @transform_0, window_bounds = array<i64: 24, 135>}, {pipeline_mode = #tpu.pipeline_mode<synchronous>, transform_indices = @transform_1, window_bounds = array<i64: 135, 128>}, {pipeline_mode = #tpu.pipeline_mode<synchronous>, transform_indices = @transform_2, window_bounds = array<i64: 1, 128>}, {pipeline_mode = #tpu.pipeline_mode<synchronous>, transform_indices = @transform_3, window_bounds = array<i64: 1, 128>}, {pipeline_mode = #tpu.pipeline_mode<synchronous>, transform_indices = @transform_4, window_bounds = array<i64: 1, 128>}, {pipeline_mode = #tpu.pipeline_mode<synchronous>, transform_indices = @transform_5, window_bounds = array<i64: 128, 64>}, {pipeline_mode = #tpu.pipeline_mode<synchronous>, transform_indices = @transform_6, window_bounds = array<i64: 1, 64>}, {pipeline_mode = #tpu.pipeline_mode<synchronous>, transform_indices = @transform_7, window_bounds = array<i64: 1, 64>}, {pipeline_mode = #tpu.pipeline_mode<synchronous>, transform_indices = @transform_8, window_bounds = array<i64: 1, 64>}, {pipeline_mode = #tpu.pipeline_mode<synchronous>, transform_indices = @transform_9, window_bounds = array<i64: 64, 32>}, {pipeline_mode = #tpu.pipeline_mode<synchronous>, transform_indices = @transform_10, window_bounds = array<i64: 1, 32>}, {pipeline_mode = #tpu.pipeline_mode<synchronous>, transform_indices = @transform_11, window_bounds = array<i64: 1, 32>}, {pipeline_mode = #tpu.pipeline_mode<synchronous>, transform_indices = @transform_12, window_bounds = array<i64: 1, 32>}, {pipeline_mode = #tpu.pipeline_mode<synchronous>, transform_indices = @transform_13, window_bounds = array<i64: 32, 4>}, {pipeline_mode = #tpu.pipeline_mode<synchronous>, transform_indices = @transform_14, window_bounds = array<i64: 1, 4>}, {transform_indices = @transform_15, window_bounds = array<i64: 24, 4>}]} {
    %c0 = arith.constant 0 : index
    %c0_0 = arith.constant 0 : index
    %0 = vector.load %arg1[%c0, %c0_0] : memref<24x135xbf16, #tpu.memory_space<vmem>>, vector<24x135xbf16>
    %c0_1 = arith.constant 0 : index
    %c0_2 = arith.constant 0 : index
    %1 = vector.load %arg2[%c0_1, %c0_2] : memref<135x128xbf16, #tpu.memory_space<vmem>>, vector<135x128xbf16>
    %cst = arith.constant dense<0.000000e+00> : vector<24x128xf32>
    %2 = tpu.matmul %0, %1, %cst {dimension_numbers = #tpu.dot_dimension_numbers<[1], [0], [0], [1], [0, 0, 1, 1], [], []>} : vector<24x135xbf16>, vector<135x128xbf16>, vector<24x128xf32> -> vector<24x128xf32>
    %c0_3 = arith.constant 0 : index
    %c0_4 = arith.constant 0 : index
    %3 = vector.load %arg3[%c0_3, %c0_4] : memref<1x128xf32, #tpu.memory_space<vmem>>, vector<1x128xf32>
    %4 = vector.broadcast %3 : vector<1x128xf32> to vector<24x128xf32>
    %5 = arith.addf %2, %4 : vector<24x128xf32>
    %cst_5 = arith.constant 0.000000e+00 : f32
    %6 = vector.broadcast %cst_5 : f32 to vector<24x128xf32>
    %7 = arith.maximumf %5, %6 : vector<24x128xf32>
    %c0_6 = arith.constant 0 : index
    %c0_7 = arith.constant 0 : index
    %8 = vector.load %arg4[%c0_6, %c0_7] : memref<1x128xf32, #tpu.memory_space<vmem>>, vector<1x128xf32>
    %c0_8 = arith.constant 0 : index
    %c0_9 = arith.constant 0 : index
    %9 = vector.load %arg5[%c0_8, %c0_9] : memref<1x128xf32, #tpu.memory_space<vmem>>, vector<1x128xf32>
    %cst_10 = arith.constant dense<0.000000e+00> : vector<24xf32>
    %10 = vector.multi_reduction <add>, %7, %cst_10 [1] : vector<24x128xf32> to vector<24xf32>
    %11 = vector.shape_cast %10 : vector<24xf32> to vector<24x1xf32>
    %cst_11 = arith.constant 1.280000e+02 : f32
    %12 = vector.broadcast %cst_11 : f32 to vector<24x1xf32>
    %13 = arith.divf %11, %12 : vector<24x1xf32>
    %14 = vector.broadcast %13 : vector<24x1xf32> to vector<24x128xf32>
    %15 = arith.subf %7, %14 : vector<24x128xf32>
    %16 = arith.mulf %15, %15 : vector<24x128xf32>
    %cst_12 = arith.constant dense<0.000000e+00> : vector<24xf32>
    %17 = vector.multi_reduction <add>, %16, %cst_12 [1] : vector<24x128xf32> to vector<24xf32>
    %18 = vector.shape_cast %17 : vector<24xf32> to vector<24x1xf32>
    %cst_13 = arith.constant 1.280000e+02 : f32
    %19 = vector.broadcast %cst_13 : f32 to vector<24x1xf32>
    %20 = arith.divf %18, %19 : vector<24x1xf32>
    %cst_14 = arith.constant 9.99999974E-6 : f32
    %21 = vector.broadcast %cst_14 : f32 to vector<24x1xf32>
    %22 = arith.addf %20, %21 : vector<24x1xf32>
    %23 = math.rsqrt %22 : vector<24x1xf32>
    %24 = vector.broadcast %23 : vector<24x1xf32> to vector<24x128xf32>
    %25 = arith.mulf %15, %24 : vector<24x128xf32>
    %26 = vector.broadcast %8 : vector<1x128xf32> to vector<24x128xf32>
    %27 = arith.mulf %25, %26 : vector<24x128xf32>
    %28 = vector.broadcast %9 : vector<1x128xf32> to vector<24x128xf32>
    %29 = arith.addf %27, %28 : vector<24x128xf32>
    %30 = arith.truncf %29 : vector<24x128xf32> to vector<24x128xbf16>
    %c0_15 = arith.constant 0 : index
    %c0_16 = arith.constant 0 : index
    %31 = vector.load %arg6[%c0_15, %c0_16] : memref<128x64xbf16, #tpu.memory_space<vmem>>, vector<128x64xbf16>
    %cst_17 = arith.constant dense<0.000000e+00> : vector<24x64xf32>
    %32 = tpu.matmul %30, %31, %cst_17 {dimension_numbers = #tpu.dot_dimension_numbers<[1], [0], [0], [1], [0, 0, 1, 1], [], []>} : vector<24x128xbf16>, vector<128x64xbf16>, vector<24x64xf32> -> vector<24x64xf32>
    %c0_18 = arith.constant 0 : index
    %c0_19 = arith.constant 0 : index
    %33 = vector.load %arg7[%c0_18, %c0_19] : memref<1x64xf32, #tpu.memory_space<vmem>>, vector<1x64xf32>
    %34 = vector.broadcast %33 : vector<1x64xf32> to vector<24x64xf32>
    %35 = arith.addf %32, %34 : vector<24x64xf32>
    %cst_20 = arith.constant 0.000000e+00 : f32
    %36 = vector.broadcast %cst_20 : f32 to vector<24x64xf32>
    %37 = arith.maximumf %35, %36 : vector<24x64xf32>
    %c0_21 = arith.constant 0 : index
    %c0_22 = arith.constant 0 : index
    %38 = vector.load %arg8[%c0_21, %c0_22] : memref<1x64xf32, #tpu.memory_space<vmem>>, vector<1x64xf32>
    %c0_23 = arith.constant 0 : index
    %c0_24 = arith.constant 0 : index
    %39 = vector.load %arg9[%c0_23, %c0_24] : memref<1x64xf32, #tpu.memory_space<vmem>>, vector<1x64xf32>
    %cst_25 = arith.constant dense<0.000000e+00> : vector<24xf32>
    %40 = vector.multi_reduction <add>, %37, %cst_25 [1] : vector<24x64xf32> to vector<24xf32>
    %41 = vector.shape_cast %40 : vector<24xf32> to vector<24x1xf32>
    %cst_26 = arith.constant 6.400000e+01 : f32
    %42 = vector.broadcast %cst_26 : f32 to vector<24x1xf32>
    %43 = arith.divf %41, %42 : vector<24x1xf32>
    %44 = vector.broadcast %43 : vector<24x1xf32> to vector<24x64xf32>
    %45 = arith.subf %37, %44 : vector<24x64xf32>
    %46 = arith.mulf %45, %45 : vector<24x64xf32>
    %cst_27 = arith.constant dense<0.000000e+00> : vector<24xf32>
    %47 = vector.multi_reduction <add>, %46, %cst_27 [1] : vector<24x64xf32> to vector<24xf32>
    %48 = vector.shape_cast %47 : vector<24xf32> to vector<24x1xf32>
    %cst_28 = arith.constant 6.400000e+01 : f32
    %49 = vector.broadcast %cst_28 : f32 to vector<24x1xf32>
    %50 = arith.divf %48, %49 : vector<24x1xf32>
    %cst_29 = arith.constant 9.99999974E-6 : f32
    %51 = vector.broadcast %cst_29 : f32 to vector<24x1xf32>
    %52 = arith.addf %50, %51 : vector<24x1xf32>
    %53 = math.rsqrt %52 : vector<24x1xf32>
    %54 = vector.broadcast %53 : vector<24x1xf32> to vector<24x64xf32>
    %55 = arith.mulf %45, %54 : vector<24x64xf32>
    %56 = vector.broadcast %38 : vector<1x64xf32> to vector<24x64xf32>
    %57 = arith.mulf %55, %56 : vector<24x64xf32>
    %58 = vector.broadcast %39 : vector<1x64xf32> to vector<24x64xf32>
    %59 = arith.addf %57, %58 : vector<24x64xf32>
    %60 = arith.truncf %59 : vector<24x64xf32> to vector<24x64xbf16>
    %c0_30 = arith.constant 0 : index
    %c0_31 = arith.constant 0 : index
    %61 = vector.load %arg10[%c0_30, %c0_31] : memref<64x32xbf16, #tpu.memory_space<vmem>>, vector<64x32xbf16>
    %cst_32 = arith.constant dense<0.000000e+00> : vector<24x32xf32>
    %62 = tpu.matmul %60, %61, %cst_32 {dimension_numbers = #tpu.dot_dimension_numbers<[1], [0], [0], [1], [0, 0, 1, 1], [], []>} : vector<24x64xbf16>, vector<64x32xbf16>, vector<24x32xf32> -> vector<24x32xf32>
    %c0_33 = arith.constant 0 : index
    %c0_34 = arith.constant 0 : index
    %63 = vector.load %arg11[%c0_33, %c0_34] : memref<1x32xf32, #tpu.memory_space<vmem>>, vector<1x32xf32>
    %64 = vector.broadcast %63 : vector<1x32xf32> to vector<24x32xf32>
    %65 = arith.addf %62, %64 : vector<24x32xf32>
    %cst_35 = arith.constant 0.000000e+00 : f32
    %66 = vector.broadcast %cst_35 : f32 to vector<24x32xf32>
    %67 = arith.maximumf %65, %66 : vector<24x32xf32>
    %c0_36 = arith.constant 0 : index
    %c0_37 = arith.constant 0 : index
    %68 = vector.load %arg12[%c0_36, %c0_37] : memref<1x32xf32, #tpu.memory_space<vmem>>, vector<1x32xf32>
    %c0_38 = arith.constant 0 : index
    %c0_39 = arith.constant 0 : index
    %69 = vector.load %arg13[%c0_38, %c0_39] : memref<1x32xf32, #tpu.memory_space<vmem>>, vector<1x32xf32>
    %cst_40 = arith.constant dense<0.000000e+00> : vector<24xf32>
    %70 = vector.multi_reduction <add>, %67, %cst_40 [1] : vector<24x32xf32> to vector<24xf32>
    %71 = vector.shape_cast %70 : vector<24xf32> to vector<24x1xf32>
    %cst_41 = arith.constant 3.200000e+01 : f32
    %72 = vector.broadcast %cst_41 : f32 to vector<24x1xf32>
    %73 = arith.divf %71, %72 : vector<24x1xf32>
    %74 = vector.broadcast %73 : vector<24x1xf32> to vector<24x32xf32>
    %75 = arith.subf %67, %74 : vector<24x32xf32>
    %76 = arith.mulf %75, %75 : vector<24x32xf32>
    %cst_42 = arith.constant dense<0.000000e+00> : vector<24xf32>
    %77 = vector.multi_reduction <add>, %76, %cst_42 [1] : vector<24x32xf32> to vector<24xf32>
    %78 = vector.shape_cast %77 : vector<24xf32> to vector<24x1xf32>
    %cst_43 = arith.constant 3.200000e+01 : f32
    %79 = vector.broadcast %cst_43 : f32 to vector<24x1xf32>
    %80 = arith.divf %78, %79 : vector<24x1xf32>
    %cst_44 = arith.constant 9.99999974E-6 : f32
    %81 = vector.broadcast %cst_44 : f32 to vector<24x1xf32>
    %82 = arith.addf %80, %81 : vector<24x1xf32>
    %83 = math.rsqrt %82 : vector<24x1xf32>
    %84 = vector.broadcast %83 : vector<24x1xf32> to vector<24x32xf32>
    %85 = arith.mulf %75, %84 : vector<24x32xf32>
    %86 = vector.broadcast %68 : vector<1x32xf32> to vector<24x32xf32>
    %87 = arith.mulf %85, %86 : vector<24x32xf32>
    %88 = vector.broadcast %69 : vector<1x32xf32> to vector<24x32xf32>
    %89 = arith.addf %87, %88 : vector<24x32xf32>
    %90 = arith.truncf %89 : vector<24x32xf32> to vector<24x32xbf16>
    %c0_45 = arith.constant 0 : index
    %c0_46 = arith.constant 0 : index
    %91 = vector.load %arg14[%c0_45, %c0_46] : memref<32x4xbf16, #tpu.memory_space<vmem>>, vector<32x4xbf16>
    %cst_47 = arith.constant dense<0.000000e+00> : vector<24x4xf32>
    %92 = tpu.matmul %90, %91, %cst_47 {dimension_numbers = #tpu.dot_dimension_numbers<[1], [0], [0], [1], [0, 0, 1, 1], [], []>} : vector<24x32xbf16>, vector<32x4xbf16>, vector<24x4xf32> -> vector<24x4xf32>
    %c0_48 = arith.constant 0 : index
    %c0_49 = arith.constant 0 : index
    %93 = vector.load %arg15[%c0_48, %c0_49] : memref<1x4xf32, #tpu.memory_space<vmem>>, vector<1x4xf32>
    %94 = vector.broadcast %93 : vector<1x4xf32> to vector<24x4xf32>
    %95 = arith.addf %92, %94 : vector<24x4xf32>
    %c0_50 = arith.constant 0 : index
    %c0_51 = arith.constant 0 : index
    %96 = vector.load %arg16[%c0_50, %c0_51] : memref<24x4xf32, #tpu.memory_space<vmem>>, vector<24x4xf32>
    tpu.vector_store %arg16[%c0_50, %c0_51], %95 {strides = array<i32>} : memref<24x4xf32, #tpu.memory_space<vmem>>, vector<24x4xf32>,
    return
  }
  func.func @transform_0(%arg0: i32) -> (i32, i32) {
    %c0_i32 = arith.constant 0 : i32
    %c0_i32_0 = arith.constant 0 : i32
    return %arg0, %c0_i32 : i32, i32
  }
  func.func @transform_1(%arg0: i32) -> (i32, i32) {
    %c0_i32 = arith.constant 0 : i32
    %c0_i32_0 = arith.constant 0 : i32
    %c0_i32_1 = arith.constant 0 : i32
    return %c0_i32, %c0_i32_0 : i32, i32
  }
  func.func @transform_2(%arg0: i32) -> (i32, i32) {
    %c0_i32 = arith.constant 0 : i32
    %c0_i32_0 = arith.constant 0 : i32
    %c0_i32_1 = arith.constant 0 : i32
    return %c0_i32, %c0_i32_0 : i32, i32
  }
  func.func @transform_3(%arg0: i32) -> (i32, i32) {
    %c0_i32 = arith.constant 0 : i32
    %c0_i32_0 = arith.constant 0 : i32
    %c0_i32_1 = arith.constant 0 : i32
    return %c0_i32, %c0_i32_0 : i32, i32
  }
  func.func @transform_4(%arg0: i32) -> (i32, i32) {
    %c0_i32 = arith.constant 0 : i32
    %c0_i32_0 = arith.constant 0 : i32
    %c0_i32_1 = arith.constant 0 : i32
    return %c0_i32, %c0_i32_0 : i32, i32
  }
  func.func @transform_5(%arg0: i32) -> (i32, i32) {
    %c0_i32 = arith.constant 0 : i32
    %c0_i32_0 = arith.constant 0 : i32
    %c0_i32_1 = arith.constant 0 : i32
    return %c0_i32, %c0_i32_0 : i32, i32
  }
  func.func @transform_6(%arg0: i32) -> (i32, i32) {
    %c0_i32 = arith.constant 0 : i32
    %c0_i32_0 = arith.constant 0 : i32
    %c0_i32_1 = arith.constant 0 : i32
    return %c0_i32, %c0_i32_0 : i32, i32
  }
  func.func @transform_7(%arg0: i32) -> (i32, i32) {
    %c0_i32 = arith.constant 0 : i32
    %c0_i32_0 = arith.constant 0 : i32
    %c0_i32_1 = arith.constant 0 : i32
    return %c0_i32, %c0_i32_0 : i32, i32
  }
  func.func @transform_8(%arg0: i32) -> (i32, i32) {
    %c0_i32 = arith.constant 0 : i32
    %c0_i32_0 = arith.constant 0 : i32
    %c0_i32_1 = arith.constant 0 : i32
    return %c0_i32, %c0_i32_0 : i32, i32
  }
  func.func @transform_9(%arg0: i32) -> (i32, i32) {
    %c0_i32 = arith.constant 0 : i32
    %c0_i32_0 = arith.constant 0 : i32
    %c0_i32_1 = arith.constant 0 : i32
    return %c0_i32, %c0_i32_0 : i32, i32
  }
  func.func @transform_10(%arg0: i32) -> (i32, i32) {
    %c0_i32 = arith.constant 0 : i32
    %c0_i32_0 = arith.constant 0 : i32
    %c0_i32_1 = arith.constant 0 : i32
    return %c0_i32, %c0_i32_0 : i32, i32
  }
  func.func @transform_11(%arg0: i32) -> (i32, i32) {
    %c0_i32 = arith.constant 0 : i32
    %c0_i32_0 = arith.constant 0 : i32
    %c0_i32_1 = arith.constant 0 : i32
    return %c0_i32, %c0_i32_0 : i32, i32
  }
  func.func @transform_12(%arg0: i32) -> (i32, i32) {
    %c0_i32 = arith.constant 0 : i32
    %c0_i32_0 = arith.constant 0 : i32
    %c0_i32_1 = arith.constant 0 : i32
    return %c0_i32, %c0_i32_0 : i32, i32
  }
  func.func @transform_13(%arg0: i32) -> (i32, i32) {
    %c0_i32 = arith.constant 0 : i32
    %c0_i32_0 = arith.constant 0 : i32
    %c0_i32_1 = arith.constant 0 : i32
    return %c0_i32, %c0_i32_0 : i32, i32
  }
  func.func @transform_14(%arg0: i32) -> (i32, i32) {
    %c0_i32 = arith.constant 0 : i32
    %c0_i32_0 = arith.constant 0 : i32
    %c0_i32_1 = arith.constant 0 : i32
    return %c0_i32, %c0_i32_0 : i32, i32
  }
  func.func @transform_15(%arg0: i32) -> (i32, i32) {
    %c0_i32 = arith.constant 0 : i32
    %c0_i32_0 = arith.constant 0 : i32
    return %arg0, %c0_i32 : i32, i32
  }
}

</mosaic_0001>

<llo_original>
// kernel: encoder_forward.1
$region0: #{encoder_forward.1}
  #allocation0 [shape = 'u32[]', space=smem, size = 0x4, offset = 0x4, fixed_abs, tag = 'smem constant byte address 0x4 - core index']
  #allocation1 [shape = 'u32[144,128]{1,0:T(1,128)}', space=vmem, size = 0x12000, scoped, tag = 'internal scratch']
  %s0 = inlined_call_operand.vmem [shape: bf16[24,135], index: 0, kind: input, shape index: {}]
  %s1 = inlined_call_operand.vmem [shape: bf16[135,128], index: 1, kind: input, shape index: {}]
  %s2 = inlined_call_operand.vmem [shape: f32[1,128], index: 2, kind: input, shape index: {}]
  %s3 = inlined_call_operand.vmem [shape: f32[1,128], index: 3, kind: input, shape index: {}]
  %s4 = inlined_call_operand.vmem [shape: f32[1,128], index: 4, kind: input, shape index: {}]
  %s5 = inlined_call_operand.vmem [shape: bf16[128,64], index: 5, kind: input, shape index: {}]
  %s6 = inlined_call_operand.vmem [shape: f32[1,64], index: 6, kind: input, shape index: {}]
  %s7 = inlined_call_operand.vmem [shape: f32[1,64], index: 7, kind: input, shape index: {}]
  %s8 = inlined_call_operand.vmem [shape: f32[1,64], index: 8, kind: input, shape index: {}]
  %s9 = inlined_call_operand.vmem [shape: bf16[64,32], index: 9, kind: input, shape index: {}]
  %s10 = inlined_call_operand.vmem [shape: f32[1,32], index: 10, kind: input, shape index: {}]
  %s11 = inlined_call_operand.vmem [shape: f32[1,32], index: 11, kind: input, shape index: {}]
  %s12 = inlined_call_operand.vmem [shape: f32[1,32], index: 12, kind: input, shape index: {}]
  %s13 = inlined_call_operand.vmem [shape: bf16[32,4], index: 13, kind: input, shape index: {}]
  %s14 = inlined_call_operand.vmem [shape: f32[1,4], index: 14, kind: input, shape index: {}]
  %s15 = inlined_call_operand.vmem [shape: f32[24,4], index: 15, kind: output, shape index: {}]
  %s16 = sld [smem:[#allocation0]]
  $region70: #{encoder_forward.1} parent=0
    _
  %s18 = ssub.s32 1, %s16
  %s19 = scalar_select 0, %s18, %s16
  // Predicated region
  $region2: #{encoder_forward.1} parent=0 // pred_check
    _
  $region3: #{encoder_forward.1} parent=0 // pred_check_branch
    %21 = sbr.rel (0) target = $region5
  $region4: #{encoder_forward.1} parent=0 // pred_region
    _
  $region5: #{encoder_forward.1} parent=0 // pred_fallthru
    _
  // Predicated region
  $region6: #{encoder_forward.1} parent=0 // pred_check
    _
  $region7: #{encoder_forward.1} parent=0 // pred_check_branch
    %23 = sbr.rel (0) target = $region9
  $region8: #{encoder_forward.1} parent=0 // pred_region
    _
  $region9: #{encoder_forward.1} parent=0 // pred_fallthru
    _
  // Predicated region
  $region10: #{encoder_forward.1} parent=0 // pred_check
    _
  $region11: #{encoder_forward.1} parent=0 // pred_check_branch
    %25 = sbr.rel (0) target = $region13
  $region12: #{encoder_forward.1} parent=0 // pred_region
    _
  $region13: #{encoder_forward.1} parent=0 // pred_fallthru
    _
  // Predicated region
  $region14: #{encoder_forward.1} parent=0 // pred_check
    _
  $region15: #{encoder_forward.1} parent=0 // pred_check_branch
    %27 = sbr.rel (0) target = $region17
  $region16: #{encoder_forward.1} parent=0 // pred_region
    _
  $region17: #{encoder_forward.1} parent=0 // pred_fallthru
    _
  // Predicated region
  $region18: #{encoder_forward.1} parent=0 // pred_check
    _
  $region19: #{encoder_forward.1} parent=0 // pred_check_branch
    %29 = sbr.rel (0) target = $region21
  $region20: #{encoder_forward.1} parent=0 // pred_region
    _
  $region21: #{encoder_forward.1} parent=0 // pred_fallthru
    _
  // Predicated region
  $region22: #{encoder_forward.1} parent=0 // pred_check
    _
  $region23: #{encoder_forward.1} parent=0 // pred_check_branch
    %31 = sbr.rel (0) target = $region25
  $region24: #{encoder_forward.1} parent=0 // pred_region
    _
  $region25: #{encoder_forward.1} parent=0 // pred_fallthru
    _
  // Predicated region
  $region26: #{encoder_forward.1} parent=0 // pred_check
    _
  $region27: #{encoder_forward.1} parent=0 // pred_check_branch
    %33 = sbr.rel (0) target = $region29
  $region28: #{encoder_forward.1} parent=0 // pred_region
    _
  $region29: #{encoder_forward.1} parent=0 // pred_fallthru
    _
  // Predicated region
  $region30: #{encoder_forward.1} parent=0 // pred_check
    _
  $region31: #{encoder_forward.1} parent=0 // pred_check_branch
    %35 = sbr.rel (0) target = $region33
  $region32: #{encoder_forward.1} parent=0 // pred_region
    _
  $region33: #{encoder_forward.1} parent=0 // pred_fallthru
    _
  // Predicated region
  $region34: #{encoder_forward.1} parent=0 // pred_check
    _
  $region35: #{encoder_forward.1} parent=0 // pred_check_branch
    %37 = sbr.rel (0) target = $region37
  $region36: #{encoder_forward.1} parent=0 // pred_region
    _
  $region37: #{encoder_forward.1} parent=0 // pred_fallthru
    _
  // Predicated region
  $region38: #{encoder_forward.1} parent=0 // pred_check
    _
  $region39: #{encoder_forward.1} parent=0 // pred_check_branch
    %39 = sbr.rel (0) target = $region41
  $region40: #{encoder_forward.1} parent=0 // pred_region
    _
  $region41: #{encoder_forward.1} parent=0 // pred_fallthru
    _
  // Predicated region
  $region42: #{encoder_forward.1} parent=0 // pred_check
    _
  $region43: #{encoder_forward.1} parent=0 // pred_check_branch
    %41 = sbr.rel (0) target = $region45
  $region44: #{encoder_forward.1} parent=0 // pred_region
    _
  $region45: #{encoder_forward.1} parent=0 // pred_fallthru
    _
  // Predicated region
  $region46: #{encoder_forward.1} parent=0 // pred_check
    _
  $region47: #{encoder_forward.1} parent=0 // pred_check_branch
    %43 = sbr.rel (0) target = $region49
  $region48: #{encoder_forward.1} parent=0 // pred_region
    _
  $region49: #{encoder_forward.1} parent=0 // pred_fallthru
    _
  // Predicated region
  $region50: #{encoder_forward.1} parent=0 // pred_check
    _
  $region51: #{encoder_forward.1} parent=0 // pred_check_branch
    %45 = sbr.rel (0) target = $region53
  $region52: #{encoder_forward.1} parent=0 // pred_region
    _
  $region53: #{encoder_forward.1} parent=0 // pred_fallthru
    _
  // Predicated region
  $region54: #{encoder_forward.1} parent=0 // pred_check
    _
  $region55: #{encoder_forward.1} parent=0 // pred_check_branch
    %47 = sbr.rel (0) target = $region57
  $region56: #{encoder_forward.1} parent=0 // pred_region
    _
  $region57: #{encoder_forward.1} parent=0 // pred_fallthru
    _
  // Predicated region
  $region58: #{encoder_forward.1} parent=0 // pred_check
    _
  $region59: #{encoder_forward.1} parent=0 // pred_check_branch
    %49 = sbr.rel (0) target = $region61
  $region60: #{encoder_forward.1} parent=0 // pred_region
    _
  $region61: #{encoder_forward.1} parent=0 // pred_fallthru
    _
  %v51 = vld [vmem:[%s0] sm:$0xff]
  %v52 = vld [vmem:[%s0 + $0x8] sm:$0xff]
  %v53 = vld [vmem:[%s0 + $0x10] sm:$0xff]
  %v54 = vld [vmem:[%s1] sm:$0xf]
  %v55 = vld [vmem:[%s1 + $0x4] sm:$0xf]
  %v56 = vld [vmem:[%s1 + $0x8] sm:$0xf]
  %v57 = vld [vmem:[%s1 + $0xc] sm:$0xf]
  %v58 = vld [vmem:[%s1 + $0x10] sm:$0xf]
  %v59 = vld [vmem:[%s1 + $0x14] sm:$0xf]
  %v60 = vld [vmem:[%s1 + $0x18] sm:$0xf]
  %v61 = vld [vmem:[%s1 + $0x1c] sm:$0xf]
  %v62 = vld [vmem:[%s1 + $0x20] sm:$0xf]
  %v63 = vld [vmem:[%s1 + $0x24] sm:$0xf]
  %v64 = vld [vmem:[%s1 + $0x28] sm:$0xf]
  %v65 = vld [vmem:[%s1 + $0x2c] sm:$0xf]
  %v66 = vld [vmem:[%s1 + $0x30] sm:$0xf]
  %v67 = vld [vmem:[%s1 + $0x34] sm:$0xf]
  %v68 = vld [vmem:[%s1 + $0x38] sm:$0xf]
  %v69 = vld [vmem:[%s1 + $0x3c] sm:$0xf]
  %v70 = vld [vmem:[%s1 + $0x40] sm:$0xf]
  %v71 = vld [vmem:[%s2] sm:$0x1]
  %v73 = vlaneseq
  %v74 = vshrl.u32 %v73, 7
  %v75 = vsub.s32 0, %v74
  %v76 = vrot.slane %v71, %v75
  %v81 = vunpack.c.l.b16 %v51
  %v82 = vunpack.c.h.b16 %v51
  %v83 = vunpack.c.l.b16 %v52
  %v84 = vunpack.c.h.b16 %v52
  %v85 = vunpack.c.l.b16 %v53
  %v86 = vunpack.c.h.b16 %v53
  %v87 = vpack.c.b16 %v83, %v81
  %v88 = vpack.c.b16 %v84, %v82
  %v89 = vpack.c.b16 %v85, %v85
  %v90 = vpack.c.b16 %v86, %v86
  %v110 = vunpack.c.l.b16 %v54
  %v111 = vunpack.c.l.b16 %v55
  %v112 = vunpack.c.l.b16 %v56
  %v113 = vunpack.c.l.b16 %v57
  %v114 = vunpack.c.l.b16 %v58
  %v115 = vunpack.c.l.b16 %v59
  %v116 = vunpack.c.l.b16 %v60
  %v117 = vunpack.c.l.b16 %v61
  %v118 = vunpack.c.l.b16 %v62
  %v119 = vunpack.c.l.b16 %v63
  %v120 = vunpack.c.l.b16 %v64
  %v121 = vunpack.c.l.b16 %v65
  %v122 = vunpack.c.l.b16 %v66
  %v123 = vunpack.c.l.b16 %v67
  %v124 = vunpack.c.l.b16 %v68
  %v125 = vunpack.c.l.b16 %v69
  %v126 = vunpack.c.l.b16 %v70
  %v127 = vpack.c.b16 %v111, %v110
  %v128 = vpack.c.b16 %v113, %v112
  %v129 = vpack.c.b16 %v115, %v114
  %v130 = vpack.c.b16 %v117, %v116
  %v131 = vpack.c.b16 %v119, %v118
  %v132 = vpack.c.b16 %v121, %v120
  %v133 = vpack.c.b16 %v123, %v122
  %v134 = vpack.c.b16 %v125, %v124
  %v135 = vpack.c.b16 %v126, %v126
  %vm144 = vcmask 56320
  %v146 = vsel %vm144, %v88, 0
  %v149 = vsel %vm144, %v90, 0
  %vm151 = vcmask 1042432
  %vm152 = vcmask 1043456
  %v153 = vsel %vm151, 4294967295, 65535
  %v154 = vsel %vm152, %v153, 0
  %v156 = vand.u32 %v135, %v154
  %158 = vmatprep.subr.bf16.mxu0 0
  %159 = vmatpush1.bf16.msra.mxu0 %v134
  %160 = vmatprep.subr.bf16.mxu0 0
  %161 = vmatpush1.bf16.msra.mxu0 %v133
  %162 = vmatprep.subr.bf16.mxu0 0
  %163 = vmatpush1.bf16.msra.mxu0 %v132
  %164 = vmatprep.subr.bf16.mxu0 0
  %165 = vmatpush1.bf16.msra.mxu0 %v131
  %166 = vmatprep.subr.bf16.mxu0 0
  %167 = vmatpush1.bf16.msra.mxu0 %v130
  %168 = vmatprep.subr.bf16.mxu0 0
  %169 = vmatpush1.bf16.msra.mxu0 %v129
  %170 = vmatprep.subr.bf16.mxu0 0
  %171 = vmatpush1.bf16.msra.mxu0 %v128
  %172 = vmatprep.subr.bf16.mxu0 0
  %173 = vmatpush1.bf16.msra.mxu0 %v127
  %174 = vmatprep.subr.bf16.mxu0 0
  %175 = vmatpush2.bf16.msra.mxu0 0
  %176 = vmatprep.subr.bf16.mxu0 0
  %177 = vmatpush2.bf16.msra.mxu0 0
  %178 = vmatprep.subr.bf16.mxu0 0
  %179 = vmatpush2.bf16.msra.mxu0 0
  %180 = vmatprep.subr.bf16.mxu0 0
  %181 = vmatpush2.bf16.msra.mxu0 0
  %182 = vmatprep.subr.bf16.mxu0 0
  %183 = vmatpush2.bf16.msra.mxu0 0
  %184 = vmatprep.subr.bf16.mxu0 0
  %185 = vmatpush2.bf16.msra.mxu0 0
  %186 = vmatprep.subr.bf16.mxu0 0
  %187 = vmatpush2.bf16.msra.mxu0 0
  %188 = vmatprep.subr.bf16.mxu0 0
  %189 = vmatpush2.bf16.msra.mxu0 %v156
  %190 = vmatprep.mubr.bf16.mxu0 %v146
  %191 = vmatmul.mubr.bf16.gmra.mxu0 %v87
  %v192 = vpop.f32.mrf.mxu0
  %v193 = vadd.f32 %v76, %v192
  %v194 = vpop.f32.mrf.mxu0
  %v195 = vpop.f32.mrf.mxu0
  %v196 = vadd.f32 %v76, %v195
  %v197 = vpop.f32.mrf.mxu0
  %198 = vmatprep.mubr.bf16.mxu0 %v149
  %199 = vmatmul.mubr.bf16.gmra.mxu0 %v89
  %v200 = vpop.f32.mrf.mxu0
  %v201 = vadd.f32 %v76, %v200
  %v202 = vpop.f32.mrf.mxu0
  %v203 = vpop.f32.mrf.mxu0
  %v204 = vpop.f32.mrf.mxu0
  %205 = vdwg.mxu0
  %v206 = vmax.f32 %v193, 0.0
  %v207 = vmax.f32 %v196, 0.0
  %v208 = vmax.f32 %v201, 0.0
  %v209 = vld [vmem:[%s3] sm:$0x1]
  %v210 = vld [vmem:[%s4] sm:$0x1]
  %211 = vadd.xlane.f32.xlu0 %v206
  %v212 = vpop.xlane.xlu0 %211
  %213 = vadd.xlane.f32.xlu0 %v207
  %v214 = vpop.xlane.xlu0 %213
  %215 = vadd.xlane.f32.xlu0 %v208
  %v216 = vpop.xlane.xlu0 %215
  %v217 = vrcp.pop 128.0
  %v218 = vmul.f32 %v212, %v217
  %v219 = vmul.f32 %v214, %v217
  %v220 = vmul.f32 %v216, %v217
  %v221 = vsub.f32 %v206, %v218
  %v222 = vsub.f32 %v207, %v219
  %v223 = vsub.f32 %v208, %v220
  %v224 = vmul.f32 %v221, %v221
  %v225 = vmul.f32 %v222, %v222
  %v226 = vmul.f32 %v223, %v223
  %227 = vadd.xlane.f32.xlu0 %v224
  %v228 = vpop.xlane.xlu0 %227
  %229 = vadd.xlane.f32.xlu0 %v225
  %v230 = vpop.xlane.xlu0 %229
  %231 = vadd.xlane.f32.xlu0 %v226
  %v232 = vpop.xlane.xlu0 %231
  %v233 = vmul.f32 %v228, %v217
  %v234 = vmul.f32 %v230, %v217
  %v235 = vmul.f32 %v232, %v217
  %v236 = vadd.f32 %v233, 1e-05
  %v237 = vadd.f32 %v234, 1e-05
  %v238 = vadd.f32 %v235, 1e-05
  %v239 = vrsqrt.pop %v236
  %v240 = vrsqrt.pop %v237
  %v241 = vrsqrt.pop %v238
  %v242 = vmul.f32 %v221, %v239
  %v243 = vmul.f32 %v222, %v240
  %v244 = vmul.f32 %v223, %v241
  %v246 = vlaneseq
  %v247 = vshrl.u32 %v246, 7
  %v248 = vsub.s32 0, %v247
  %v249 = vrot.slane %v209, %v248
  %v251 = vmul.f32 %v242, %v249
  %v252 = vmul.f32 %v243, %v249
  %v253 = vmul.f32 %v244, %v249
  %v255 = vlaneseq
  %v256 = vshrl.u32 %v255, 7
  %v257 = vsub.s32 0, %v256
  %v258 = vrot.slane %v210, %v257
  %v260 = vadd.f32 %v251, %v258
  %v261 = vadd.f32 %v252, %v258
  %v262 = vadd.f32 %v253, %v258
  %v263 = vpack.c.bf16 %v261, %v260
  %v264 = vpack.c.bf16 %v262, %v262
  %v265 = vld [vmem:[%s5] sm:$0xf]
  %v266 = vld [vmem:[%s5 + $0x4] sm:$0xf]
  %v267 = vld [vmem:[%s5 + $0x8] sm:$0xf]
  %v268 = vld [vmem:[%s5 + $0xc] sm:$0xf]
  %v269 = vld [vmem:[%s5 + $0x10] sm:$0xf]
  %v270 = vld [vmem:[%s5 + $0x14] sm:$0xf]
  %v271 = vld [vmem:[%s5 + $0x18] sm:$0xf]
  %v272 = vld [vmem:[%s5 + $0x1c] sm:$0xf]
  %v273 = vld [vmem:[%s5 + $0x20] sm:$0xf]
  %v274 = vld [vmem:[%s5 + $0x24] sm:$0xf]
  %v275 = vld [vmem:[%s5 + $0x28] sm:$0xf]
  %v276 = vld [vmem:[%s5 + $0x2c] sm:$0xf]
  %v277 = vld [vmem:[%s5 + $0x30] sm:$0xf]
  %v278 = vld [vmem:[%s5 + $0x34] sm:$0xf]
  %v279 = vld [vmem:[%s5 + $0x38] sm:$0xf]
  %v280 = vld [vmem:[%s5 + $0x3c] sm:$0xf]
  %v281 = vld [vmem:[%s6] sm:$0x1]
  %v283 = vlaneseq
  %v284 = vshrl.u32 %v283, 7
  %v285 = vsub.s32 0, %v284
  %v286 = vrot.slane %v281, %v285
  %v304 = vunpack.c.l.b16 %v265
  %v305 = vunpack.c.l.b16 %v266
  %v306 = vunpack.c.l.b16 %v267
  %v307 = vunpack.c.l.b16 %v268
  %v308 = vunpack.c.l.b16 %v269
  %v309 = vunpack.c.l.b16 %v270
  %v310 = vunpack.c.l.b16 %v271
  %v311 = vunpack.c.l.b16 %v272
  %v312 = vunpack.c.l.b16 %v273
  %v313 = vunpack.c.l.b16 %v274
  %v314 = vunpack.c.l.b16 %v275
  %v315 = vunpack.c.l.b16 %v276
  %v316 = vunpack.c.l.b16 %v277
  %v317 = vunpack.c.l.b16 %v278
  %v318 = vunpack.c.l.b16 %v279
  %v319 = vunpack.c.l.b16 %v280
  %v320 = vpack.c.b16 %v305, %v304
  %v321 = vpack.c.b16 %v307, %v306
  %v322 = vpack.c.b16 %v309, %v308
  %v323 = vpack.c.b16 %v311, %v310
  %v324 = vpack.c.b16 %v313, %v312
  %v325 = vpack.c.b16 %v315, %v314
  %v326 = vpack.c.b16 %v317, %v316
  %v327 = vpack.c.b16 %v319, %v318
  %336 = vmatprep.subr.bf16.mxu0 0
  %337 = vmatpush1.bf16.msra.mxu0 %v327
  %338 = vmatprep.subr.bf16.mxu0 0
  %339 = vmatpush1.bf16.msra.mxu0 %v326
  %340 = vmatprep.subr.bf16.mxu0 0
  %341 = vmatpush1.bf16.msra.mxu0 %v325
  %342 = vmatprep.subr.bf16.mxu0 0
  %343 = vmatpush1.bf16.msra.mxu0 %v324
  %344 = vmatprep.subr.bf16.mxu0 0
  %345 = vmatpush1.bf16.msra.mxu0 %v323
  %346 = vmatprep.subr.bf16.mxu0 0
  %347 = vmatpush1.bf16.msra.mxu0 %v322
  %348 = vmatprep.subr.bf16.mxu0 0
  %349 = vmatpush1.bf16.msra.mxu0 %v321
  %350 = vmatprep.subr.bf16.mxu0 0
  %351 = vmatpush1.bf16.msra.mxu0 %v320
  %352 = vmatprep.subr.bf16.mxu0 0
  %353 = vmatpush2.bf16.msra.mxu0 0
  %354 = vmatprep.subr.bf16.mxu0 0
  %355 = vmatpush2.bf16.msra.mxu0 0
  %356 = vmatprep.subr.bf16.mxu0 0
  %357 = vmatpush2.bf16.msra.mxu0 0
  %358 = vmatprep.subr.bf16.mxu0 0
  %359 = vmatpush2.bf16.msra.mxu0 0
  %360 = vmatprep.subr.bf16.mxu0 0
  %361 = vmatpush2.bf16.msra.mxu0 0
  %362 = vmatprep.subr.bf16.mxu0 0
  %363 = vmatpush2.bf16.msra.mxu0 0
  %364 = vmatprep.subr.bf16.mxu0 0
  %365 = vmatpush2.bf16.msra.mxu0 0
  %366 = vmatprep.subr.bf16.mxu0 0
  %367 = vmatpush2.bf16.msra.mxu0 0
  %368 = vmatprep.mubr.bf16.mxu0 0
  %369 = vmatmul.mubr.bf16.gmra.mxu0 %v263
  %v370 = vpop.f32.mrf.mxu0
  %v371 = vadd.f32 %v286, %v370
  %v372 = vpop.f32.mrf.mxu0
  %v373 = vpop.f32.mrf.mxu0
  %v374 = vadd.f32 %v286, %v373
  %v375 = vpop.f32.mrf.mxu0
  %376 = vmatprep.mubr.bf16.mxu0 0
  %377 = vmatmul.mubr.bf16.gmra.mxu0 %v264
  %v378 = vpop.f32.mrf.mxu0
  %v379 = vadd.f32 %v286, %v378
  %v380 = vpop.f32.mrf.mxu0
  %v381 = vpop.f32.mrf.mxu0
  %v382 = vpop.f32.mrf.mxu0
  %383 = vdwg.mxu0
  %v384 = vmax.f32 %v371, 0.0
  %v385 = vmax.f32 %v374, 0.0
  %v386 = vmax.f32 %v379, 0.0
  %v387 = vld [vmem:[%s7] sm:$0x1]
  %v388 = vld [vmem:[%s8] sm:$0x1]
  %vm389 = vcmask 523264
  %v390 = vsel %vm389, %v384, 0.0
  %391 = vadd.xlane.f32.xlu0 %v390
  %v392 = vpop.xlane.xlu0 %391
  %v393 = vsel %vm389, %v385, 0.0
  %394 = vadd.xlane.f32.xlu0 %v393
  %v395 = vpop.xlane.xlu0 %394
  %v396 = vsel %vm389, %v386, 0.0
  %397 = vadd.xlane.f32.xlu0 %v396
  %v398 = vpop.xlane.xlu0 %397
  %v399 = vrcp.pop 64.0
  %v400 = vmul.f32 %v392, %v399
  %v401 = vmul.f32 %v395, %v399
  %v402 = vmul.f32 %v398, %v399
  %v403 = vsub.f32 %v384, %v400
  %v404 = vsub.f32 %v385, %v401
  %v405 = vsub.f32 %v386, %v402
  %v406 = vmul.f32 %v403, %v403
  %v407 = vmul.f32 %v404, %v404
  %v408 = vmul.f32 %v405, %v405
  %v409 = vsel %vm389, %v406, 0.0
  %410 = vadd.xlane.f32.xlu0 %v409
  %v411 = vpop.xlane.xlu0 %410
  %v412 = vsel %vm389, %v407, 0.0
  %413 = vadd.xlane.f32.xlu0 %v412
  %v414 = vpop.xlane.xlu0 %413
  %v415 = vsel %vm389, %v408, 0.0
  %416 = vadd.xlane.f32.xlu0 %v415
  %v417 = vpop.xlane.xlu0 %416
  %v418 = vmul.f32 %v411, %v399
  %v419 = vmul.f32 %v414, %v399
  %v420 = vmul.f32 %v417, %v399
  %v421 = vadd.f32 %v418, 1e-05
  %v422 = vadd.f32 %v419, 1e-05
  %v423 = vadd.f32 %v420, 1e-05
  %v424 = vrsqrt.pop %v421
  %v425 = vrsqrt.pop %v422
  %v426 = vrsqrt.pop %v423
  %v427 = vmul.f32 %v403, %v424
  %v428 = vmul.f32 %v404, %v425
  %v429 = vmul.f32 %v405, %v426
  %v431 = vlaneseq
  %v432 = vshrl.u32 %v431, 7
  %v433 = vsub.s32 0, %v432
  %v434 = vrot.slane %v387, %v433
  %v436 = vmul.f32 %v427, %v434
  %v437 = vmul.f32 %v428, %v434
  %v438 = vmul.f32 %v429, %v434
  %v440 = vlaneseq
  %v441 = vshrl.u32 %v440, 7
  %v442 = vsub.s32 0, %v441
  %v443 = vrot.slane %v388, %v442
  %v445 = vadd.f32 %v436, %v443
  %v446 = vadd.f32 %v437, %v443
  %v447 = vadd.f32 %v438, %v443
  %v448 = vpack.c.bf16 %v446, %v445
  %v449 = vpack.c.bf16 %v447, %v447
  %v450 = vld [vmem:[%s9] sm:$0xf]
  %v451 = vld [vmem:[%s9 + $0x4] sm:$0xf]
  %v452 = vld [vmem:[%s9 + $0x8] sm:$0xf]
  %v453 = vld [vmem:[%s9 + $0xc] sm:$0xf]
  %v454 = vld [vmem:[%s9 + $0x10] sm:$0xf]
  %v455 = vld [vmem:[%s9 + $0x14] sm:$0xf]
  %v456 = vld [vmem:[%s9 + $0x18] sm:$0xf]
  %v457 = vld [vmem:[%s9 + $0x1c] sm:$0xf]
  %v458 = vld [vmem:[%s10] sm:$0x1]
  %v460 = vlaneseq
  %v461 = vshrl.u32 %v460, 7
  %v462 = vsub.s32 0, %v461
  %v463 = vrot.slane %v458, %v462
  %v473 = vunpack.c.l.b16 %v450
  %v474 = vunpack.c.l.b16 %v451
  %v475 = vunpack.c.l.b16 %v452
  %v476 = vunpack.c.l.b16 %v453
  %v477 = vunpack.c.l.b16 %v454
  %v478 = vunpack.c.l.b16 %v455
  %v479 = vunpack.c.l.b16 %v456
  %v480 = vunpack.c.l.b16 %v457
  %v481 = vpack.c.b16 %v474, %v473
  %v482 = vpack.c.b16 %v476, %v475
  %v483 = vpack.c.b16 %v478, %v477
  %v484 = vpack.c.b16 %v480, %v479
  %v490 = vsel %vm389, %v448, 0
  %v493 = vsel %vm389, %v449, 0
  %495 = vmatprep.subr.bf16.mxu0 0
  %496 = vmatpush1.bf16.msra.mxu0 0
  %497 = vmatprep.subr.bf16.mxu0 0
  %498 = vmatpush1.bf16.msra.mxu0 0
  %499 = vmatprep.subr.bf16.mxu0 0
  %500 = vmatpush1.bf16.msra.mxu0 0
  %501 = vmatprep.subr.bf16.mxu0 0
  %502 = vmatpush1.bf16.msra.mxu0 0
  %503 = vmatprep.subr.bf16.mxu0 0
  %504 = vmatpush1.bf16.msra.mxu0 %v484
  %505 = vmatprep.subr.bf16.mxu0 0
  %506 = vmatpush1.bf16.msra.mxu0 %v483
  %507 = vmatprep.subr.bf16.mxu0 0
  %508 = vmatpush1.bf16.msra.mxu0 %v482
  %509 = vmatprep.subr.bf16.mxu0 0
  %510 = vmatpush1.bf16.msra.mxu0 %v481
  %511 = vmatprep.subr.bf16.mxu0 0
  %512 = vmatpush2.bf16.msra.mxu0 0
  %513 = vmatprep.subr.bf16.mxu0 0
  %514 = vmatpush2.bf16.msra.mxu0 0
  %515 = vmatprep.subr.bf16.mxu0 0
  %516 = vmatpush2.bf16.msra.mxu0 0
  %517 = vmatprep.subr.bf16.mxu0 0
  %518 = vmatpush2.bf16.msra.mxu0 0
  %519 = vmatprep.subr.bf16.mxu0 0
  %520 = vmatpush2.bf16.msra.mxu0 0
  %521 = vmatprep.subr.bf16.mxu0 0
  %522 = vmatpush2.bf16.msra.mxu0 0
  %523 = vmatprep.subr.bf16.mxu0 0
  %524 = vmatpush2.bf16.msra.mxu0 0
  %525 = vmatprep.subr.bf16.mxu0 0
  %526 = vmatpush2.bf16.msra.mxu0 0
  %527 = vmatprep.mubr.bf16.mxu0 0
  %528 = vmatmul.mubr.bf16.gmra.mxu0 %v490
  %v529 = vpop.f32.mrf.mxu0
  %v530 = vadd.f32 %v463, %v529
  %v531 = vpop.f32.mrf.mxu0
  %v532 = vpop.f32.mrf.mxu0
  %v533 = vadd.f32 %v463, %v532
  %v534 = vpop.f32.mrf.mxu0
  %535 = vmatprep.mubr.bf16.mxu0 0
  %536 = vmatmul.mubr.bf16.gmra.mxu0 %v493
  %v537 = vpop.f32.mrf.mxu0
  %v538 = vadd.f32 %v463, %v537
  %v539 = vpop.f32.mrf.mxu0
  %v540 = vpop.f32.mrf.mxu0
  %v541 = vpop.f32.mrf.mxu0
  %542 = vdwg.mxu0
  %v543 = vmax.f32 %v530, 0.0
  %v544 = vmax.f32 %v533, 0.0
  %v545 = vmax.f32 %v538, 0.0
  %v546 = vld [vmem:[%s11] sm:$0x1]
  %v547 = vld [vmem:[%s12] sm:$0x1]
  %vm548 = vcmask 261120
  %v549 = vsel %vm548, %v543, 0.0
  %550 = vadd.xlane.f32.xlu0 %v549
  %v551 = vpop.xlane.xlu0 %550
  %v552 = vsel %vm548, %v544, 0.0
  %553 = vadd.xlane.f32.xlu0 %v552
  %v554 = vpop.xlane.xlu0 %553
  %v555 = vsel %vm548, %v545, 0.0
  %556 = vadd.xlane.f32.xlu0 %v555
  %v557 = vpop.xlane.xlu0 %556
  %v558 = vrcp.pop 32.0
  %v559 = vmul.f32 %v551, %v558
  %v560 = vmul.f32 %v554, %v558
  %v561 = vmul.f32 %v557, %v558
  %v562 = vsub.f32 %v543, %v559
  %v563 = vsub.f32 %v544, %v560
  %v564 = vsub.f32 %v545, %v561
  %v565 = vmul.f32 %v562, %v562
  %v566 = vmul.f32 %v563, %v563
  %v567 = vmul.f32 %v564, %v564
  %v568 = vsel %vm548, %v565, 0.0
  %569 = vadd.xlane.f32.xlu0 %v568
  %v570 = vpop.xlane.xlu0 %569
  %v571 = vsel %vm548, %v566, 0.0
  %572 = vadd.xlane.f32.xlu0 %v571
  %v573 = vpop.xlane.xlu0 %572
  %v574 = vsel %vm548, %v567, 0.0
  %575 = vadd.xlane.f32.xlu0 %v574
  %v576 = vpop.xlane.xlu0 %575
  %v577 = vmul.f32 %v570, %v558
  %v578 = vmul.f32 %v573, %v558
  %v579 = vmul.f32 %v576, %v558
  %v580 = vadd.f32 %v577, 1e-05
  %v581 = vadd.f32 %v578, 1e-05
  %v582 = vadd.f32 %v579, 1e-05
  %v583 = vrsqrt.pop %v580
  %v584 = vrsqrt.pop %v581
  %v585 = vrsqrt.pop %v582
  %v586 = vmul.f32 %v562, %v583
  %v587 = vmul.f32 %v563, %v584
  %v588 = vmul.f32 %v564, %v585
  %v590 = vlaneseq
  %v591 = vshrl.u32 %v590, 7
  %v592 = vsub.s32 0, %v591
  %v593 = vrot.slane %v546, %v592
  %v595 = vmul.f32 %v586, %v593
  %v596 = vmul.f32 %v587, %v593
  %v597 = vmul.f32 %v588, %v593
  %v599 = vlaneseq
  %v600 = vshrl.u32 %v599, 7
  %v601 = vsub.s32 0, %v600
  %v602 = vrot.slane %v547, %v601
  %v604 = vadd.f32 %v595, %v602
  %v605 = vadd.f32 %v596, %v602
  %v606 = vadd.f32 %v597, %v602
  %v607 = vpack.c.bf16 %v605, %v604
  %v608 = vpack.c.bf16 %v606, %v606
  %v609 = vld [vmem:[%s13] sm:$0xf]
  %v610 = vld [vmem:[%s13 + $0x4] sm:$0xf]
  %v611 = vld [vmem:[%s13 + $0x8] sm:$0xf]
  %v612 = vld [vmem:[%s13 + $0xc] sm:$0xf]
  %v613 = vld [vmem:[%s14] sm:$0x1]
  %v615 = vlaneseq
  %v616 = vshrl.u32 %v615, 7
  %v617 = vsub.s32 0, %v616
  %v618 = vrot.slane %v613, %v617
  %v624 = vunpack.c.l.b16 %v609
  %v625 = vunpack.c.l.b16 %v610
  %v626 = vunpack.c.l.b16 %v611
  %v627 = vunpack.c.l.b16 %v612
  %v628 = vpack.c.b16 %v625, %v624
  %v629 = vpack.c.b16 %v627, %v626
  %v633 = vsel %vm548, %v607, 0
  %v636 = vsel %vm548, %v608, 0
  %638 = vmatprep.subr.bf16.mxu0 0
  %639 = vmatpush1.bf16.msra.mxu0 0
  %640 = vmatprep.subr.bf16.mxu0 0
  %641 = vmatpush1.bf16.msra.mxu0 0
  %642 = vmatprep.subr.bf16.mxu0 0
  %643 = vmatpush1.bf16.msra.mxu0 0
  %644 = vmatprep.subr.bf16.mxu0 0
  %645 = vmatpush1.bf16.msra.mxu0 0
  %646 = vmatprep.subr.bf16.mxu0 0
  %647 = vmatpush1.bf16.msra.mxu0 0
  %648 = vmatprep.subr.bf16.mxu0 0
  %649 = vmatpush1.bf16.msra.mxu0 0
  %650 = vmatprep.subr.bf16.mxu0 0
  %651 = vmatpush1.bf16.msra.mxu0 %v629
  %652 = vmatprep.subr.bf16.mxu0 0
  %653 = vmatpush1.bf16.msra.mxu0 %v628
  %654 = vmatprep.subr.bf16.mxu0 0
  %655 = vmatpush2.bf16.msra.mxu0 0
  %656 = vmatprep.subr.bf16.mxu0 0
  %657 = vmatpush2.bf16.msra.mxu0 0
  %658 = vmatprep.subr.bf16.mxu0 0
  %659 = vmatpush2.bf16.msra.mxu0 0
  %660 = vmatprep.subr.bf16.mxu0 0
  %661 = vmatpush2.bf16.msra.mxu0 0
  %662 = vmatprep.subr.bf16.mxu0 0
  %663 = vmatpush2.bf16.msra.mxu0 0
  %664 = vmatprep.subr.bf16.mxu0 0
  %665 = vmatpush2.bf16.msra.mxu0 0
  %666 = vmatprep.subr.bf16.mxu0 0
  %667 = vmatpush2.bf16.msra.mxu0 0
  %668 = vmatprep.subr.bf16.mxu0 0
  %669 = vmatpush2.bf16.msra.mxu0 0
  %670 = vmatprep.mubr.bf16.mxu0 0
  %671 = vmatmul.mubr.bf16.gmra.mxu0 %v633
  %v672 = vpop.f32.mrf.mxu0
  %v673 = vadd.f32 %v618, %v672
  %v674 = vpop.f32.mrf.mxu0
  %v675 = vpop.f32.mrf.mxu0
  %v676 = vadd.f32 %v618, %v675
  %v677 = vpop.f32.mrf.mxu0
  %678 = vmatprep.mubr.bf16.mxu0 0
  %679 = vmatmul.mubr.bf16.gmra.mxu0 %v636
  %v680 = vpop.f32.mrf.mxu0
  %v681 = vadd.f32 %v618, %v680
  %v682 = vpop.f32.mrf.mxu0
  %v683 = vpop.f32.mrf.mxu0
  %v684 = vpop.f32.mrf.mxu0
  %685 = vdwg.mxu0
  %vm686 = vcmask 31744
  %687 = vst.msk [vmem:[%s15] sm:$0xff] %vm686, %v673
  %688 = vst.msk [vmem:[%s15 + $0x8] sm:$0xff] %vm686, %v676
  %689 = vst.msk [vmem:[%s15 + $0x10] sm:$0xff] %vm686, %v681
  // Predicated region
  $region62: #{encoder_forward.1} parent=0 // pred_check
    _
  $region63: #{encoder_forward.1} parent=0 // pred_check_branch
    %691 = sbr.rel (0) target = $region65
  $region64: #{encoder_forward.1} parent=0 // pred_region
    _
  $region65: #{encoder_forward.1} parent=0 // pred_fallthru
    _
  // Predicated region
  $region66: #{encoder_forward.1} parent=0 // pred_check
    _
  $region67: #{encoder_forward.1} parent=0 // pred_check_branch
    %693 = sbr.rel (0) target = $region69
  $region68: #{encoder_forward.1} parent=0 // pred_region
    _
  $region69: #{encoder_forward.1} parent=0 // pred_fallthru
    _

</llo_original>
